<compile_context>
chip_gen: v7x
topology: tpu7x:2x2x1
jax: 0.10.0
libtpu: 0.0.40
codegen_flags: <defaults>
</compile_context>

<pallas_src>
import math

import jax
import jax.numpy as jnp
from jax.experimental import pallas as pl
from jax.experimental.pallas import tpu as pltpu


def _round_up(n: int, m: int) -> int:
    return ((n + m - 1) // m) * m


def _num_tensorcores() -> int:
    """Best-effort TensorCore count per chip (2 on v7x, else 1). Perf-only."""
    try:
        kind = jax.devices()[0].device_kind.lower()
    except Exception:  # pragma: no cover - defensive, perf-only heuristic
        return 1
    if "v7" in kind or "7x" in kind:
        return 2
    return 1


def mlp_kernel(x_ref, w1_ref, b1_ref, w2_ref, b2_ref, w3_ref, b3_ref, o_ref):
    """Fused 3-layer MLP for one batch tile: (Linear -> ReLU) x2 -> Linear.

    Matmuls run on the MXU in the weights' dtype (bf16 by default) with f32
    accumulation; bias-add / ReLU stay in f32 on the VPU (v5e has no bf16
    VALU path).  x arrives in its original dtype and is cast here, so the
    wrapper never pays a separate HBM cast pass.
    """
    mm_dtype = w1_ref.dtype

    # Layer 1: Linear(D_in -> H1) + ReLU
    h = jnp.dot(x_ref[...].astype(mm_dtype), w1_ref[...],
                preferred_element_type=jnp.float32)
    h = jnp.maximum(h + b1_ref[...], 0.0)          # (1, H1) bias broadcasts

    # Layer 2: Linear(H1 -> H2) + ReLU
    h = jnp.dot(h.astype(mm_dtype), w2_ref[...],
                preferred_element_type=jnp.float32)
    h = jnp.maximum(h + b2_ref[...], 0.0)

    # Output layer: Linear(H2 -> D_out), no output activation.
    out = jnp.dot(h.astype(mm_dtype), w3_ref[...],
                  preferred_element_type=jnp.float32)
    o_ref[...] = (out + b3_ref[...]).astype(o_ref.dtype)


def mlp_forward(x, params, *, batch_tile=1024, matmul_dtype=jnp.bfloat16,
                out_dtype=None):
    """Run the fused MLP kernel, tiling over the batch dimension.

    batch_tile: max rows of x per grid step (per-step fixed cost dominates at
    these shapes, so bigger is better until VMEM; 1024 uses <1 MiB of tiles).
    matmul_dtype: dtype fed to the MXU (bf16 default; pass jnp.float32 for
    exactness).  out_dtype: output dtype (defaults to x.dtype; pass bf16 to
    halve the writeback stream if downstream tolerates it).
    """
    w1, b1, w2, b2, w3, b3 = params
    if out_dtype is None:
        out_dtype = x.dtype
    B, d_in = x.shape
    h1 = w1.shape[1]
    h2 = w2.shape[1]
    d_out = w3.shape[1]

    # Row alignment: bf16 packs two rows per sublane -> multiple of 16.
    align = 16 if matmul_dtype == jnp.bfloat16 else 8
    batch_tile = max(align, _round_up(batch_tile, align))

    ncores = _num_tensorcores()
    if ncores > 1 and B >= 2 * ncores * align:
        # 2-TC parts (v7x): >=2 grid steps per TensorCore so the "parallel"
        # batch axis shards across cores AND the pipeline overlaps DMA/compute.
        cap = _round_up(pl.cdiv(B, 2 * ncores), align)
    else:
        # Single TensorCore (v5e/v6e): no benefit from forced splitting.
        cap = _round_up(max(B, 1), align)
    tile = max(align, min(batch_tile, cap))

    # Ragged batches: let Pallas handle the partial edge block (no jnp.pad of
    # x, no post-kernel row slice -> two fewer HBM passes).  Compute is
    # row-wise, so garbage edge rows never touch valid rows and are never
    # written back.
    grid = (pl.cdiv(B, tile),)

    # MXU operands: weights cast once in the wrapper (tiny, ~200 KB); biases
    # stay f32 so the bias-add / ReLU run in f32 on the VPU.
    w1 = w1.astype(matmul_dtype)
    w2 = w2.astype(matmul_dtype)
    w3 = w3.astype(matmul_dtype)

    # Grid-invariant weights/biases: constant index_map keeps them resident
    # in VMEM; single-buffer them (double-buffering would only double their
    # VMEM footprint for no benefit).
    def resident(shape):
        return pl.BlockSpec(shape, lambda i: (0, 0),
                            pipeline_mode=pl.Buffered(buffer_count=1))

    in_specs = [
        pl.BlockSpec((tile, d_in), lambda i: (i, 0)),   # x (pipelined over B)
        resident((d_in, h1)),                           # W1
        resident((1, h1)),                              # b1
        resident((h1, h2)),                             # W2
        resident((1, h2)),                              # b2
        resident((h2, d_out)),                          # W3
        resident((1, d_out)),                           # b3
    ]
    # Output block uses the full (unpadded) last dim: legal because it equals
    # the array's last dim; the narrow masked store costs far less than the
    # 8x-inflated padded writeback it replaces.
    out_specs = pl.BlockSpec((tile, d_out), lambda i: (i, 0))

    return pl.pallas_call(
        mlp_kernel,
        out_shape=jax.ShapeDtypeStruct((B, d_out), out_dtype),
        grid_spec=pltpu.PrefetchScalarGridSpec(
            num_scalar_prefetch=0,
            grid=grid,
            in_specs=in_specs,
            out_specs=out_specs,
        ),
        compiler_params=pltpu.CompilerParams(
            dimension_semantics=("parallel",),
            # No vmem_limit override: tiles + resident weights are a few MiB,
            # well under the default scoped limit on every generation (and a
            # 64 MiB request would leave no headroom on v7x).
        ),
    )(x, w1, b1, w2, b2, w3, b3)


def init_linear(key, in_features, out_features):
    """Deterministic init matching nn.Linear's default (uniform +/- 1/sqrt(fan_in))."""
    kw, kb = jax.random.split(key)
    bound = 1.0 / math.sqrt(in_features)
    # Stored as [in, out] so the kernel does x @ W.
    w = jax.random.uniform(kw, (in_features, out_features), jnp.float32,
                           minval=-bound, maxval=bound)
    b = jax.random.uniform(kb, (1, out_features), jnp.float32,
                           minval=-bound, maxval=bound)
    return w, b


def mlp_reference(x, params, matmul_dtype=jnp.float32):
    """Pure-JAX reference that mirrors the kernel's casting behaviour."""
    w1, b1, w2, b2, w3, b3 = params
    w1, w2, w3 = (w.astype(matmul_dtype) for w in (w1, w2, w3))
    h = jnp.dot(x.astype(matmul_dtype), w1, preferred_element_type=jnp.float32)
    h = jnp.maximum(h + b1, 0.0)
    h = jnp.dot(h.astype(matmul_dtype), w2, preferred_element_type=jnp.float32)
    h = jnp.maximum(h + b2, 0.0)
    return jnp.dot(h.astype(matmul_dtype), w3,
                   preferred_element_type=jnp.float32) + b3


# TODO(synk): LayerNorm (ln=True), Dropout (dropout!=None) and output_act are
# disabled by the module's default constructor args and are not implemented.

if __name__ == "__main__":
    # Shapes consistent with MLP(input_dim=32, output_dim=16,
    # hidden_layers=[256, 256]).
    D_IN, H1, H2, D_OUT = 32, 256, 256, 16

    key = jax.random.PRNGKey(0)
    kx1, kx2, k1, k2, k3 = jax.random.split(key, 5)

    w1, b1 = init_linear(k1, D_IN, H1)
    w2, b2 = init_linear(k2, H1, H2)
    w3, b3 = init_linear(k3, H2, D_OUT)
    params = (w1, b1, w2, b2, w3, b3)

    # 1) Default fast path: bf16 MXU operands, f32 accumulation.
    B1 = 256
    x1 = jax.random.normal(kx1, (B1, D_IN), jnp.float32)
    out1 = jax.block_until_ready(mlp_forward(x1, params))
    ref1 = mlp_reference(x1, params, matmul_dtype=jnp.bfloat16)
    assert out1.shape == (B1, D_OUT)
    assert jnp.allclose(out1, ref1, atol=1e-2, rtol=1e-2), "bf16 path mismatch"

    # 2) Exact f32 path on a ragged batch (exercises the partial edge block
    #    and the narrow, unpadded output head).
    B2 = 100
    x2 = jax.random.normal(kx2, (B2, D_IN), jnp.float32)
    out2 = jax.block_until_ready(
        mlp_forward(x2, params, batch_tile=128, matmul_dtype=jnp.float32))
    ref2 = mlp_reference(x2, params, matmul_dtype=jnp.float32)
    assert out2.shape == (B2, D_OUT)
    assert jnp.allclose(out2, ref2, atol=1e-5, rtol=1e-5), "f32 path mismatch"

    print("KERNEL_OK")
</pallas_src>

<mosaic_0001>
module attributes {stable_mosaic.version = 11 : i64} {
  func.func @mlp_kernel(%arg0: i32, %arg1: memref<256x32xf32, #tpu.memory_space<vmem>>, %arg2: memref<32x256xbf16, #tpu.memory_space<vmem>>, %arg3: memref<1x256xf32, #tpu.memory_space<vmem>>, %arg4: memref<256x256xbf16, #tpu.memory_space<vmem>>, %arg5: memref<1x256xf32, #tpu.memory_space<vmem>>, %arg6: memref<256x16xbf16, #tpu.memory_space<vmem>>, %arg7: memref<1x16xf32, #tpu.memory_space<vmem>>, %arg8: memref<256x16xf32, #tpu.memory_space<vmem>>) attributes {dimension_semantics = [#tpu.dimension_semantics<parallel>], iteration_bounds = array<i64: 1>, scalar_prefetch = 0 : i64, scratch_operands = 0 : i64, tpu.core_type = #tpu.core_type<tc>, window_params = [{transform_indices = @transform_0, window_bounds = array<i64: 256, 32>}, {pipeline_mode = #tpu.pipeline_mode<synchronous>, transform_indices = @transform_1, window_bounds = array<i64: 32, 256>}, {pipeline_mode = #tpu.pipeline_mode<synchronous>, transform_indices = @transform_2, window_bounds = array<i64: 1, 256>}, {pipeline_mode = #tpu.pipeline_mode<synchronous>, transform_indices = @transform_3, window_bounds = array<i64: 256, 256>}, {pipeline_mode = #tpu.pipeline_mode<synchronous>, transform_indices = @transform_4, window_bounds = array<i64: 1, 256>}, {pipeline_mode = #tpu.pipeline_mode<synchronous>, transform_indices = @transform_5, window_bounds = array<i64: 256, 16>}, {pipeline_mode = #tpu.pipeline_mode<synchronous>, transform_indices = @transform_6, window_bounds = array<i64: 1, 16>}, {transform_indices = @transform_7, window_bounds = array<i64: 256, 16>}]} {
    %c0 = arith.constant 0 : index
    %c0_0 = arith.constant 0 : index
    %0 = vector.load %arg1[%c0, %c0_0] : memref<256x32xf32, #tpu.memory_space<vmem>>, vector<256x32xf32>
    %1 = arith.truncf %0 : vector<256x32xf32> to vector<256x32xbf16>
    %c0_1 = arith.constant 0 : index
    %c0_2 = arith.constant 0 : index
    %2 = vector.load %arg2[%c0_1, %c0_2] : memref<32x256xbf16, #tpu.memory_space<vmem>>, vector<32x256xbf16>
    %cst = arith.constant dense<0.000000e+00> : vector<256x256xf32>
    %3 = tpu.matmul %1, %2, %cst {dimension_numbers = #tpu.dot_dimension_numbers<[1], [0], [0], [1], [0, 0, 1, 1], [], []>} : vector<256x32xbf16>, vector<32x256xbf16>, vector<256x256xf32> -> vector<256x256xf32>
    %c0_3 = arith.constant 0 : index
    %c0_4 = arith.constant 0 : index
    %4 = vector.load %arg3[%c0_3, %c0_4] : memref<1x256xf32, #tpu.memory_space<vmem>>, vector<1x256xf32>
    %5 = vector.broadcast %4 : vector<1x256xf32> to vector<256x256xf32>
    %6 = arith.addf %3, %5 : vector<256x256xf32>
    %cst_5 = arith.constant 0.000000e+00 : f32
    %7 = vector.broadcast %cst_5 : f32 to vector<256x256xf32>
    %8 = arith.maximumf %6, %7 : vector<256x256xf32>
    %9 = arith.truncf %8 : vector<256x256xf32> to vector<256x256xbf16>
    %c0_6 = arith.constant 0 : index
    %c0_7 = arith.constant 0 : index
    %10 = vector.load %arg4[%c0_6, %c0_7] : memref<256x256xbf16, #tpu.memory_space<vmem>>, vector<256x256xbf16>
    %cst_8 = arith.constant dense<0.000000e+00> : vector<256x256xf32>
    %11 = tpu.matmul %9, %10, %cst_8 {dimension_numbers = #tpu.dot_dimension_numbers<[1], [0], [0], [1], [0, 0, 1, 1], [], []>} : vector<256x256xbf16>, vector<256x256xbf16>, vector<256x256xf32> -> vector<256x256xf32>
    %c0_9 = arith.constant 0 : index
    %c0_10 = arith.constant 0 : index
    %12 = vector.load %arg5[%c0_9, %c0_10] : memref<1x256xf32, #tpu.memory_space<vmem>>, vector<1x256xf32>
    %13 = vector.broadcast %12 : vector<1x256xf32> to vector<256x256xf32>
    %14 = arith.addf %11, %13 : vector<256x256xf32>
    %cst_11 = arith.constant 0.000000e+00 : f32
    %15 = vector.broadcast %cst_11 : f32 to vector<256x256xf32>
    %16 = arith.maximumf %14, %15 : vector<256x256xf32>
    %17 = arith.truncf %16 : vector<256x256xf32> to vector<256x256xbf16>
    %c0_12 = arith.constant 0 : index
    %c0_13 = arith.constant 0 : index
    %18 = vector.load %arg6[%c0_12, %c0_13] : memref<256x16xbf16, #tpu.memory_space<vmem>>, vector<256x16xbf16>
    %cst_14 = arith.constant dense<0.000000e+00> : vector<256x16xf32>
    %19 = tpu.matmul %17, %18, %cst_14 {dimension_numbers = #tpu.dot_dimension_numbers<[1], [0], [0], [1], [0, 0, 1, 1], [], []>} : vector<256x256xbf16>, vector<256x16xbf16>, vector<256x16xf32> -> vector<256x16xf32>
    %c0_15 = arith.constant 0 : index
    %c0_16 = arith.constant 0 : index
    %20 = vector.load %arg7[%c0_15, %c0_16] : memref<1x16xf32, #tpu.memory_space<vmem>>, vector<1x16xf32>
    %21 = vector.broadcast %20 : vector<1x16xf32> to vector<256x16xf32>
    %22 = arith.addf %19, %21 : vector<256x16xf32>
    %c0_17 = arith.constant 0 : index
    %c0_18 = arith.constant 0 : index
    %23 = vector.load %arg8[%c0_17, %c0_18] : memref<256x16xf32, #tpu.memory_space<vmem>>, vector<256x16xf32>
    tpu.vector_store %arg8[%c0_17, %c0_18], %22 {strides = array<i32>} : memref<256x16xf32, #tpu.memory_space<vmem>>, vector<256x16xf32>,
    return
  }
  func.func @transform_0(%arg0: i32) -> (i32, i32) {
    %c0_i32 = arith.constant 0 : i32
    %c0_i32_0 = arith.constant 0 : i32
    return %arg0, %c0_i32 : i32, i32
  }
  func.func @transform_1(%arg0: i32) -> (i32, i32) {
    %c0_i32 = arith.constant 0 : i32
    %c0_i32_0 = arith.constant 0 : i32
    %c0_i32_1 = arith.constant 0 : i32
    return %c0_i32, %c0_i32_0 : i32, i32
  }
  func.func @transform_2(%arg0: i32) -> (i32, i32) {
    %c0_i32 = arith.constant 0 : i32
    %c0_i32_0 = arith.constant 0 : i32
    %c0_i32_1 = arith.constant 0 : i32
    return %c0_i32, %c0_i32_0 : i32, i32
  }
  func.func @transform_3(%arg0: i32) -> (i32, i32) {
    %c0_i32 = arith.constant 0 : i32
    %c0_i32_0 = arith.constant 0 : i32
    %c0_i32_1 = arith.constant 0 : i32
    return %c0_i32, %c0_i32_0 : i32, i32
  }
  func.func @transform_4(%arg0: i32) -> (i32, i32) {
    %c0_i32 = arith.constant 0 : i32
    %c0_i32_0 = arith.constant 0 : i32
    %c0_i32_1 = arith.constant 0 : i32
    return %c0_i32, %c0_i32_0 : i32, i32
  }
  func.func @transform_5(%arg0: i32) -> (i32, i32) {
    %c0_i32 = arith.constant 0 : i32
    %c0_i32_0 = arith.constant 0 : i32
    %c0_i32_1 = arith.constant 0 : i32
    return %c0_i32, %c0_i32_0 : i32, i32
  }
  func.func @transform_6(%arg0: i32) -> (i32, i32) {
    %c0_i32 = arith.constant 0 : i32
    %c0_i32_0 = arith.constant 0 : i32
    %c0_i32_1 = arith.constant 0 : i32
    return %c0_i32, %c0_i32_0 : i32, i32
  }
  func.func @transform_7(%arg0: i32) -> (i32, i32) {
    %c0_i32 = arith.constant 0 : i32
    %c0_i32_0 = arith.constant 0 : i32
    return %arg0, %c0_i32 : i32, i32
  }
}

</mosaic_0001>

<llo_original>
// kernel: tpu_custom_call.1
$region0: #{tpu_custom_call.1}
  #allocation0 [shape = 'u32[]', space=smem, size = 0x4, offset = 0x4, fixed_abs, tag = 'smem constant byte address 0x4 - core index']
  #allocation1 [shape = 'u32[144,128]{1,0:T(1,128)}', space=vmem, size = 0x12000, scoped, tag = 'internal scratch']
  %s0 = inlined_call_operand.vmem [shape: f32[256,32], index: 0, kind: input, shape index: {}]
  %s1 = inlined_call_operand.vmem [shape: bf16[32,256], index: 1, kind: input, shape index: {}]
  %s2 = inlined_call_operand.vmem [shape: f32[1,256], index: 2, kind: input, shape index: {}]
  %s3 = inlined_call_operand.vmem [shape: bf16[256,256], index: 3, kind: input, shape index: {}]
  %s4 = inlined_call_operand.vmem [shape: f32[1,256], index: 4, kind: input, shape index: {}]
  %s5 = inlined_call_operand.vmem [shape: bf16[256,16], index: 5, kind: input, shape index: {}]
  %s6 = inlined_call_operand.vmem [shape: f32[1,16], index: 6, kind: input, shape index: {}]
  %s7 = inlined_call_operand.vmem [shape: f32[256,16], index: 7, kind: output, shape index: {}]
  %s8 = sld [smem:[#allocation0]]
  $region38: #{tpu_custom_call.1} parent=0
    _
  %s10 = ssub.s32 1, %s8
  %s11 = scalar_select 0, %s10, %s8
  // Predicated region
  $region2: #{tpu_custom_call.1} parent=0 // pred_check
    _
  $region3: #{tpu_custom_call.1} parent=0 // pred_check_branch
    %13 = sbr.rel (0) target = $region5
  $region4: #{tpu_custom_call.1} parent=0 // pred_region
    _
  $region5: #{tpu_custom_call.1} parent=0 // pred_fallthru
    _
  // Predicated region
  $region6: #{tpu_custom_call.1} parent=0 // pred_check
    _
  $region7: #{tpu_custom_call.1} parent=0 // pred_check_branch
    %15 = sbr.rel (0) target = $region9
  $region8: #{tpu_custom_call.1} parent=0 // pred_region
    _
  $region9: #{tpu_custom_call.1} parent=0 // pred_fallthru
    _
  // Predicated region
  $region10: #{tpu_custom_call.1} parent=0 // pred_check
    _
  $region11: #{tpu_custom_call.1} parent=0 // pred_check_branch
    %17 = sbr.rel (0) target = $region13
  $region12: #{tpu_custom_call.1} parent=0 // pred_region
    _
  $region13: #{tpu_custom_call.1} parent=0 // pred_fallthru
    _
  // Predicated region
  $region14: #{tpu_custom_call.1} parent=0 // pred_check
    _
  $region15: #{tpu_custom_call.1} parent=0 // pred_check_branch
    %19 = sbr.rel (0) target = $region17
  $region16: #{tpu_custom_call.1} parent=0 // pred_region
    _
  $region17: #{tpu_custom_call.1} parent=0 // pred_fallthru
    _
  // Predicated region
  $region18: #{tpu_custom_call.1} parent=0 // pred_check
    _
  $region19: #{tpu_custom_call.1} parent=0 // pred_check_branch
    %21 = sbr.rel (0) target = $region21
  $region20: #{tpu_custom_call.1} parent=0 // pred_region
    _
  $region21: #{tpu_custom_call.1} parent=0 // pred_fallthru
    _
  // Predicated region
  $region22: #{tpu_custom_call.1} parent=0 // pred_check
    _
  $region23: #{tpu_custom_call.1} parent=0 // pred_check_branch
    %23 = sbr.rel (0) target = $region25
  $region24: #{tpu_custom_call.1} parent=0 // pred_region
    _
  $region25: #{tpu_custom_call.1} parent=0 // pred_fallthru
    _
  // Predicated region
  $region26: #{tpu_custom_call.1} parent=0 // pred_check
    _
  $region27: #{tpu_custom_call.1} parent=0 // pred_check_branch
    %25 = sbr.rel (0) target = $region29
  $region28: #{tpu_custom_call.1} parent=0 // pred_region
    _
  $region29: #{tpu_custom_call.1} parent=0 // pred_fallthru
    _
  %v27 = vld [vmem:[%s0] sm:$0xff]
  %v28 = vld [vmem:[%s0 + $0x8] sm:$0xff]
  %v29 = vld [vmem:[%s0 + $0x10] sm:$0xff]
  %v30 = vld [vmem:[%s0 + $0x18] sm:$0xff]
  %v31 = vld [vmem:[%s0 + $0x20] sm:$0xff]
  %v32 = vld [vmem:[%s0 + $0x28] sm:$0xff]
  %v33 = vld [vmem:[%s0 + $0x30] sm:$0xff]
  %v34 = vld [vmem:[%s0 + $0x38] sm:$0xff]
  %v35 = vld [vmem:[%s0 + $0x40] sm:$0xff]
  %v36 = vld [vmem:[%s0 + $0x48] sm:$0xff]
  %v37 = vld [vmem:[%s0 + $0x50] sm:$0xff]
  %v38 = vld [vmem:[%s0 + $0x58] sm:$0xff]
  %v39 = vld [vmem:[%s0 + $0x60] sm:$0xff]
  %v40 = vld [vmem:[%s0 + $0x68] sm:$0xff]
  %v41 = vld [vmem:[%s0 + $0x70] sm:$0xff]
  %v42 = vld [vmem:[%s0 + $0x78] sm:$0xff]
  %v43 = vld [vmem:[%s0 + $0x80] sm:$0xff]
  %v44 = vld [vmem:[%s0 + $0x88] sm:$0xff]
  %v45 = vld [vmem:[%s0 + $0x90] sm:$0xff]
  %v46 = vld [vmem:[%s0 + $0x98] sm:$0xff]
  %v47 = vld [vmem:[%s0 + $0xa0] sm:$0xff]
  %v48 = vld [vmem:[%s0 + $0xa8] sm:$0xff]
  %v49 = vld [vmem:[%s0 + $0xb0] sm:$0xff]
  %v50 = vld [vmem:[%s0 + $0xb8] sm:$0xff]
  %v51 = vld [vmem:[%s0 + $0xc0] sm:$0xff]
  %v52 = vld [vmem:[%s0 + $0xc8] sm:$0xff]
  %v53 = vld [vmem:[%s0 + $0xd0] sm:$0xff]
  %v54 = vld [vmem:[%s0 + $0xd8] sm:$0xff]
  %v55 = vld [vmem:[%s0 + $0xe0] sm:$0xff]
  %v56 = vld [vmem:[%s0 + $0xe8] sm:$0xff]
  %v57 = vld [vmem:[%s0 + $0xf0] sm:$0xff]
  %v58 = vld [vmem:[%s0 + $0xf8] sm:$0xff]
  %v59 = vpack.c.bf16 %v28, %v27
  %v60 = vpack.c.bf16 %v30, %v29
  %v61 = vpack.c.bf16 %v32, %v31
  %v62 = vpack.c.bf16 %v34, %v33
  %v63 = vpack.c.bf16 %v36, %v35
  %v64 = vpack.c.bf16 %v38, %v37
  %v65 = vpack.c.bf16 %v40, %v39
  %v66 = vpack.c.bf16 %v42, %v41
  %v67 = vpack.c.bf16 %v44, %v43
  %v68 = vpack.c.bf16 %v46, %v45
  %v69 = vpack.c.bf16 %v48, %v47
  %v70 = vpack.c.bf16 %v50, %v49
  %v71 = vpack.c.bf16 %v52, %v51
  %v72 = vpack.c.bf16 %v54, %v53
  %v73 = vpack.c.bf16 %v56, %v55
  %v74 = vpack.c.bf16 %v58, %v57
  %v75 = vld [vmem:[%s1] sm:$0xff]
  %v76 = vld [vmem:[%s1 + $0x8] sm:$0xff]
  %v77 = vld [vmem:[%s1 + $0x10] sm:$0xff]
  %v78 = vld [vmem:[%s1 + $0x18] sm:$0xff]
  %v79 = vld [vmem:[%s2] sm:$0x3]
  %v81 = vlaneseq
  %v82 = vshrl.u32 %v81, 7
  %v83 = vsub.s32 0, %v82
  %v84 = vrot.slane %v79, %v83
  %v85 = vlaneseq
  %v86 = vshrl.u32 %v85, 7
  %v87 = vsub.s32 1, %v86
  %v88 = vrot.slane %v79, %v87
  %v95 = vunpack.c.l.b16 %v75
  %v96 = vunpack.c.h.b16 %v75
  %v97 = vunpack.c.l.b16 %v76
  %v98 = vunpack.c.h.b16 %v76
  %v99 = vunpack.c.l.b16 %v77
  %v100 = vunpack.c.h.b16 %v77
  %v101 = vunpack.c.l.b16 %v78
  %v102 = vunpack.c.h.b16 %v78
  %v103 = vpack.c.b16 %v97, %v95
  %v104 = vpack.c.b16 %v98, %v96
  %v105 = vpack.c.b16 %v101, %v99
  %v106 = vpack.c.b16 %v102, %v100
  %vm111 = vcmask 261120
  %v113 = vsel %vm111, %v59, 0
  %v116 = vsel %vm111, %v60, 0
  %v119 = vsel %vm111, %v61, 0
  %v122 = vsel %vm111, %v62, 0
  %v125 = vsel %vm111, %v63, 0
  %v128 = vsel %vm111, %v64, 0
  %v131 = vsel %vm111, %v65, 0
  %v134 = vsel %vm111, %v66, 0
  %v137 = vsel %vm111, %v67, 0
  %v140 = vsel %vm111, %v68, 0
  %v143 = vsel %vm111, %v69, 0
  %v146 = vsel %vm111, %v70, 0
  %v149 = vsel %vm111, %v71, 0
  %v152 = vsel %vm111, %v72, 0
  %v155 = vsel %vm111, %v73, 0
  %v158 = vsel %vm111, %v74, 0
  %160 = vmatprep.subr.bf16.mxu0 %v104
  %161 = vmatpush1.bf16.msra.mxu0 %v103
  %162 = vmatprep.subr.bf16.mxu0 %v106
  %163 = vmatpush1.bf16.msra.mxu0 %v105
  %164 = vmatprep.subr.bf16.mxu0 0
  %165 = vmatpush1.bf16.msra.mxu0 0
  %166 = vmatprep.subr.bf16.mxu0 0
  %167 = vmatpush1.bf16.msra.mxu0 0
  %168 = vmatprep.subr.bf16.mxu0 0
  %169 = vmatpush1.bf16.msra.mxu0 0
  %170 = vmatprep.subr.bf16.mxu0 0
  %171 = vmatpush1.bf16.msra.mxu0 0
  %172 = vmatprep.subr.bf16.mxu0 0
  %173 = vmatpush1.bf16.msra.mxu0 0
  %174 = vmatprep.subr.bf16.mxu0 0
  %175 = vmatpush1.bf16.msra.mxu0 0
  %176 = vmatprep.subr.bf16.mxu0 0
  %177 = vmatpush1.bf16.msra.mxu0 0
  %178 = vmatprep.subr.bf16.mxu0 0
  %179 = vmatpush1.bf16.msra.mxu0 0
  %180 = vmatprep.subr.bf16.mxu0 0
  %181 = vmatpush1.bf16.msra.mxu0 0
  %182 = vmatprep.subr.bf16.mxu0 0
  %183 = vmatpush1.bf16.msra.mxu0 0
  %184 = vmatprep.subr.bf16.mxu0 0
  %185 = vmatpush1.bf16.msra.mxu0 0
  %186 = vmatprep.subr.bf16.mxu0 0
  %187 = vmatpush1.bf16.msra.mxu0 0
  %188 = vmatprep.subr.bf16.mxu0 0
  %189 = vmatpush1.bf16.msra.mxu0 0
  %190 = vmatprep.subr.bf16.mxu0 0
  %191 = vmatpush1.bf16.msra.mxu0 0
  %192 = vmatprep.mubr.bf16.mxu0 0
  %193 = vmatmul.mubr.bf16.gmra.mrb[0].mxu0 %v113
  %v194 = vpop.f32.mrb[0].mxu0
  %v195 = vadd.f32 %v84, %v194
  %v196 = vpop.f32.mrb[0].mxu0
  %v197 = vadd.f32 %v88, %v196
  %v198 = vpop.f32.mrb[0].mxu0
  %v199 = vadd.f32 %v84, %v198
  %v200 = vpop.f32.mrb[0].mxu0
  %v201 = vadd.f32 %v88, %v200
  %202 = vmatprep.mubr.bf16.mxu0 0
  %203 = vmatmul.mubr.bf16.gmra.mrb[0].mxu0 %v116
  %v204 = vpop.f32.mrb[0].mxu0
  %v205 = vadd.f32 %v84, %v204
  %v206 = vpop.f32.mrb[0].mxu0
  %v207 = vadd.f32 %v88, %v206
  %v208 = vpop.f32.mrb[0].mxu0
  %v209 = vadd.f32 %v84, %v208
  %v210 = vpop.f32.mrb[0].mxu0
  %v211 = vadd.f32 %v88, %v210
  %212 = vmatprep.mubr.bf16.mxu0 0
  %213 = vmatmul.mubr.bf16.gmra.mrb[0].mxu0 %v119
  %v214 = vpop.f32.mrb[0].mxu0
  %v215 = vadd.f32 %v84, %v214
  %v216 = vpop.f32.mrb[0].mxu0
  %v217 = vadd.f32 %v88, %v216
  %v218 = vpop.f32.mrb[0].mxu0
  %v219 = vadd.f32 %v84, %v218
  %v220 = vpop.f32.mrb[0].mxu0
  %v221 = vadd.f32 %v88, %v220
  %222 = vmatprep.mubr.bf16.mxu0 0
  %223 = vmatmul.mubr.bf16.gmra.mrb[0].mxu0 %v122
  %v224 = vpop.f32.mrb[0].mxu0
  %v225 = vadd.f32 %v84, %v224
  %v226 = vpop.f32.mrb[0].mxu0
  %v227 = vadd.f32 %v88, %v226
  %v228 = vpop.f32.mrb[0].mxu0
  %v229 = vadd.f32 %v84, %v228
  %v230 = vpop.f32.mrb[0].mxu0
  %v231 = vadd.f32 %v88, %v230
  %232 = vmatprep.mubr.bf16.mxu0 0
  %233 = vmatmul.mubr.bf16.gmra.mrb[0].mxu0 %v125
  %v234 = vpop.f32.mrb[0].mxu0
  %v235 = vadd.f32 %v84, %v234
  %v236 = vpop.f32.mrb[0].mxu0
  %v237 = vadd.f32 %v88, %v236
  %v238 = vpop.f32.mrb[0].mxu0
  %v239 = vadd.f32 %v84, %v238
  %v240 = vpop.f32.mrb[0].mxu0
  %v241 = vadd.f32 %v88, %v240
  %242 = vmatprep.mubr.bf16.mxu0 0
  %243 = vmatmul.mubr.bf16.gmra.mrb[0].mxu0 %v128
  %v244 = vpop.f32.mrb[0].mxu0
  %v245 = vadd.f32 %v84, %v244
  %v246 = vpop.f32.mrb[0].mxu0
  %v247 = vadd.f32 %v88, %v246
  %v248 = vpop.f32.mrb[0].mxu0
  %v249 = vadd.f32 %v84, %v248
  %v250 = vpop.f32.mrb[0].mxu0
  %v251 = vadd.f32 %v88, %v250
  %252 = vmatprep.mubr.bf16.mxu0 0
  %253 = vmatmul.mubr.bf16.gmra.mrb[0].mxu0 %v131
  %v254 = vpop.f32.mrb[0].mxu0
  %v255 = vadd.f32 %v84, %v254
  %v256 = vpop.f32.mrb[0].mxu0
  %v257 = vadd.f32 %v88, %v256
  %v258 = vpop.f32.mrb[0].mxu0
  %v259 = vadd.f32 %v84, %v258
  %v260 = vpop.f32.mrb[0].mxu0
  %v261 = vadd.f32 %v88, %v260
  %262 = vmatprep.mubr.bf16.mxu0 0
  %263 = vmatmul.mubr.bf16.gmra.mrb[0].mxu0 %v134
  %v264 = vpop.f32.mrb[0].mxu0
  %v265 = vadd.f32 %v84, %v264
  %v266 = vpop.f32.mrb[0].mxu0
  %v267 = vadd.f32 %v88, %v266
  %v268 = vpop.f32.mrb[0].mxu0
  %v269 = vadd.f32 %v84, %v268
  %v270 = vpop.f32.mrb[0].mxu0
  %v271 = vadd.f32 %v88, %v270
  %272 = vmatprep.mubr.bf16.mxu0 0
  %273 = vmatmul.mubr.bf16.gmra.mrb[0].mxu0 %v137
  %v274 = vpop.f32.mrb[0].mxu0
  %v275 = vadd.f32 %v84, %v274
  %v276 = vpop.f32.mrb[0].mxu0
  %v277 = vadd.f32 %v88, %v276
  %v278 = vpop.f32.mrb[0].mxu0
  %v279 = vadd.f32 %v84, %v278
  %v280 = vpop.f32.mrb[0].mxu0
  %v281 = vadd.f32 %v88, %v280
  %282 = vmatprep.mubr.bf16.mxu0 0
  %283 = vmatmul.mubr.bf16.gmra.mrb[0].mxu0 %v140
  %v284 = vpop.f32.mrb[0].mxu0
  %v285 = vadd.f32 %v84, %v284
  %v286 = vpop.f32.mrb[0].mxu0
  %v287 = vadd.f32 %v88, %v286
  %v288 = vpop.f32.mrb[0].mxu0
  %v289 = vadd.f32 %v84, %v288
  %v290 = vpop.f32.mrb[0].mxu0
  %v291 = vadd.f32 %v88, %v290
  %292 = vmatprep.mubr.bf16.mxu0 0
  %293 = vmatmul.mubr.bf16.gmra.mrb[0].mxu0 %v143
  %v294 = vpop.f32.mrb[0].mxu0
  %v295 = vadd.f32 %v84, %v294
  %v296 = vpop.f32.mrb[0].mxu0
  %v297 = vadd.f32 %v88, %v296
  %v298 = vpop.f32.mrb[0].mxu0
  %v299 = vadd.f32 %v84, %v298
  %v300 = vpop.f32.mrb[0].mxu0
  %v301 = vadd.f32 %v88, %v300
  %302 = vmatprep.mubr.bf16.mxu0 0
  %303 = vmatmul.mubr.bf16.gmra.mrb[0].mxu0 %v146
  %v304 = vpop.f32.mrb[0].mxu0
  %v305 = vadd.f32 %v84, %v304
  %v306 = vpop.f32.mrb[0].mxu0
  %v307 = vadd.f32 %v88, %v306
  %v308 = vpop.f32.mrb[0].mxu0
  %v309 = vadd.f32 %v84, %v308
  %v310 = vpop.f32.mrb[0].mxu0
  %v311 = vadd.f32 %v88, %v310
  %312 = vmatprep.mubr.bf16.mxu0 0
  %313 = vmatmul.mubr.bf16.gmra.mrb[0].mxu0 %v149
  %v314 = vpop.f32.mrb[0].mxu0
  %v315 = vadd.f32 %v84, %v314
  %v316 = vpop.f32.mrb[0].mxu0
  %v317 = vadd.f32 %v88, %v316
  %v318 = vpop.f32.mrb[0].mxu0
  %v319 = vadd.f32 %v84, %v318
  %v320 = vpop.f32.mrb[0].mxu0
  %v321 = vadd.f32 %v88, %v320
  %322 = vmatprep.mubr.bf16.mxu0 0
  %323 = vmatmul.mubr.bf16.gmra.mrb[0].mxu0 %v152
  %v324 = vpop.f32.mrb[0].mxu0
  %v325 = vadd.f32 %v84, %v324
  %v326 = vpop.f32.mrb[0].mxu0
  %v327 = vadd.f32 %v88, %v326
  %v328 = vpop.f32.mrb[0].mxu0
  %v329 = vadd.f32 %v84, %v328
  %v330 = vpop.f32.mrb[0].mxu0
  %v331 = vadd.f32 %v88, %v330
  %332 = vmatprep.mubr.bf16.mxu0 0
  %333 = vmatmul.mubr.bf16.gmra.mrb[0].mxu0 %v155
  %v334 = vpop.f32.mrb[0].mxu0
  %v335 = vadd.f32 %v84, %v334
  %v336 = vpop.f32.mrb[0].mxu0
  %v337 = vadd.f32 %v88, %v336
  %v338 = vpop.f32.mrb[0].mxu0
  %v339 = vadd.f32 %v84, %v338
  %v340 = vpop.f32.mrb[0].mxu0
  %v341 = vadd.f32 %v88, %v340
  %342 = vmatprep.mubr.bf16.mxu0 0
  %343 = vmatmul.mubr.bf16.gmra.mrb[0].mxu0 %v158
  %v344 = vpop.f32.mrb[0].mxu0
  %v345 = vadd.f32 %v84, %v344
  %v346 = vpop.f32.mrb[0].mxu0
  %v347 = vadd.f32 %v88, %v346
  %v348 = vpop.f32.mrb[0].mxu0
  %v349 = vadd.f32 %v84, %v348
  %v350 = vpop.f32.mrb[0].mxu0
  %v351 = vadd.f32 %v88, %v350
  %352 = vdwg.mxu0
  %v353 = vmax.f32 %v195, 0.0
  %v354 = vmax.f32 %v197, 0.0
  %v355 = vmax.f32 %v199, 0.0
  %v356 = vmax.f32 %v201, 0.0
  %v357 = vmax.f32 %v205, 0.0
  %v358 = vmax.f32 %v207, 0.0
  %v359 = vmax.f32 %v209, 0.0
  %v360 = vmax.f32 %v211, 0.0
  %v361 = vmax.f32 %v215, 0.0
  %v362 = vmax.f32 %v217, 0.0
  %v363 = vmax.f32 %v219, 0.0
  %v364 = vmax.f32 %v221, 0.0
  %v365 = vmax.f32 %v225, 0.0
  %v366 = vmax.f32 %v227, 0.0
  %v367 = vmax.f32 %v229, 0.0
  %v368 = vmax.f32 %v231, 0.0
  %v369 = vmax.f32 %v235, 0.0
  %v370 = vmax.f32 %v237, 0.0
  %v371 = vmax.f32 %v239, 0.0
  %v372 = vmax.f32 %v241, 0.0
  %v373 = vmax.f32 %v245, 0.0
  %v374 = vmax.f32 %v247, 0.0
  %v375 = vmax.f32 %v249, 0.0
  %v376 = vmax.f32 %v251, 0.0
  %v377 = vmax.f32 %v255, 0.0
  %v378 = vmax.f32 %v257, 0.0
  %v379 = vmax.f32 %v259, 0.0
  %v380 = vmax.f32 %v261, 0.0
  %v381 = vmax.f32 %v265, 0.0
  %v382 = vmax.f32 %v267, 0.0
  %v383 = vmax.f32 %v269, 0.0
  %v384 = vmax.f32 %v271, 0.0
  %v385 = vmax.f32 %v275, 0.0
  %v386 = vmax.f32 %v277, 0.0
  %v387 = vmax.f32 %v279, 0.0
  %v388 = vmax.f32 %v281, 0.0
  %v389 = vmax.f32 %v285, 0.0
  %v390 = vmax.f32 %v287, 0.0
  %v391 = vmax.f32 %v289, 0.0
  %v392 = vmax.f32 %v291, 0.0
  %v393 = vmax.f32 %v295, 0.0
  %v394 = vmax.f32 %v297, 0.0
  %v395 = vmax.f32 %v299, 0.0
  %v396 = vmax.f32 %v301, 0.0
  %v397 = vmax.f32 %v305, 0.0
  %v398 = vmax.f32 %v307, 0.0
  %v399 = vmax.f32 %v309, 0.0
  %v400 = vmax.f32 %v311, 0.0
  %v401 = vmax.f32 %v315, 0.0
  %v402 = vmax.f32 %v317, 0.0
  %v403 = vmax.f32 %v319, 0.0
  %v404 = vmax.f32 %v321, 0.0
  %v405 = vmax.f32 %v325, 0.0
  %v406 = vmax.f32 %v327, 0.0
  %v407 = vmax.f32 %v329, 0.0
  %v408 = vmax.f32 %v331, 0.0
  %v409 = vmax.f32 %v335, 0.0
  %v410 = vmax.f32 %v337, 0.0
  %v411 = vmax.f32 %v339, 0.0
  %v412 = vmax.f32 %v341, 0.0
  %v413 = vmax.f32 %v345, 0.0
  %v414 = vmax.f32 %v347, 0.0
  %v415 = vmax.f32 %v349, 0.0
  %v416 = vmax.f32 %v351, 0.0
  %v417 = vpack.c.bf16 %v355, %v353
  %v418 = vpack.c.bf16 %v356, %v354
  %v419 = vpack.c.bf16 %v359, %v357
  %v420 = vpack.c.bf16 %v360, %v358
  %v421 = vpack.c.bf16 %v363, %v361
  %v422 = vpack.c.bf16 %v364, %v362
  %v423 = vpack.c.bf16 %v367, %v365
  %v424 = vpack.c.bf16 %v368, %v366
  %v425 = vpack.c.bf16 %v371, %v369
  %v426 = vpack.c.bf16 %v372, %v370
  %v427 = vpack.c.bf16 %v375, %v373
  %v428 = vpack.c.bf16 %v376, %v374
  %v429 = vpack.c.bf16 %v379, %v377
  %v430 = vpack.c.bf16 %v380, %v378
  %v431 = vpack.c.bf16 %v383, %v381
  %v432 = vpack.c.bf16 %v384, %v382
  %v433 = vpack.c.bf16 %v387, %v385
  %v434 = vpack.c.bf16 %v388, %v386
  %v435 = vpack.c.bf16 %v391, %v389
  %v436 = vpack.c.bf16 %v392, %v390
  %v437 = vpack.c.bf16 %v395, %v393
  %v438 = vpack.c.bf16 %v396, %v394
  %v439 = vpack.c.bf16 %v399, %v397
  %v440 = vpack.c.bf16 %v400, %v398
  %v441 = vpack.c.bf16 %v403, %v401
  %v442 = vpack.c.bf16 %v404, %v402
  %v443 = vpack.c.bf16 %v407, %v405
  %v444 = vpack.c.bf16 %v408, %v406
  %v445 = vpack.c.bf16 %v411, %v409
  %v446 = vpack.c.bf16 %v412, %v410
  %v447 = vpack.c.bf16 %v415, %v413
  %v448 = vpack.c.bf16 %v416, %v414
  %v449 = vld [vmem:[%s3] sm:$0xff]
  %v450 = vld [vmem:[%s3 + $0x8] sm:$0xff]
  %v451 = vld [vmem:[%s3 + $0x10] sm:$0xff]
  %v452 = vld [vmem:[%s3 + $0x18] sm:$0xff]
  %v453 = vld [vmem:[%s3 + $0x20] sm:$0xff]
  %v454 = vld [vmem:[%s3 + $0x28] sm:$0xff]
  %v455 = vld [vmem:[%s3 + $0x30] sm:$0xff]
  %v456 = vld [vmem:[%s3 + $0x38] sm:$0xff]
  %v457 = vld [vmem:[%s3 + $0x40] sm:$0xff]
  %v458 = vld [vmem:[%s3 + $0x48] sm:$0xff]
  %v459 = vld [vmem:[%s3 + $0x50] sm:$0xff]
  %v460 = vld [vmem:[%s3 + $0x58] sm:$0xff]
  %v461 = vld [vmem:[%s3 + $0x60] sm:$0xff]
  %v462 = vld [vmem:[%s3 + $0x68] sm:$0xff]
  %v463 = vld [vmem:[%s3 + $0x70] sm:$0xff]
  %v464 = vld [vmem:[%s3 + $0x78] sm:$0xff]
  %v465 = vld [vmem:[%s3 + $0x80] sm:$0xff]
  %v466 = vld [vmem:[%s3 + $0x88] sm:$0xff]
  %v467 = vld [vmem:[%s3 + $0x90] sm:$0xff]
  %v468 = vld [vmem:[%s3 + $0x98] sm:$0xff]
  %v469 = vld [vmem:[%s3 + $0xa0] sm:$0xff]
  %v470 = vld [vmem:[%s3 + $0xa8] sm:$0xff]
  %v471 = vld [vmem:[%s3 + $0xb0] sm:$0xff]
  %v472 = vld [vmem:[%s3 + $0xb8] sm:$0xff]
  %v473 = vld [vmem:[%s3 + $0xc0] sm:$0xff]
  %v474 = vld [vmem:[%s3 + $0xc8] sm:$0xff]
  %v475 = vld [vmem:[%s3 + $0xd0] sm:$0xff]
  %v476 = vld [vmem:[%s3 + $0xd8] sm:$0xff]
  %v477 = vld [vmem:[%s3 + $0xe0] sm:$0xff]
  %v478 = vld [vmem:[%s3 + $0xe8] sm:$0xff]
  %v479 = vld [vmem:[%s3 + $0xf0] sm:$0xff]
  %v480 = vld [vmem:[%s3 + $0xf8] sm:$0xff]
  %v481 = vld [vmem:[%s4] sm:$0x3]
  %v483 = vlaneseq
  %v484 = vshrl.u32 %v483, 7
  %v485 = vsub.s32 0, %v484
  %v486 = vrot.slane %v481, %v485
  %v487 = vlaneseq
  %v488 = vshrl.u32 %v487, 7
  %v489 = vsub.s32 1, %v488
  %v490 = vrot.slane %v481, %v489
  %v525 = vunpack.c.l.b16 %v449
  %v526 = vunpack.c.h.b16 %v449
  %v527 = vunpack.c.l.b16 %v450
  %v528 = vunpack.c.h.b16 %v450
  %v529 = vunpack.c.l.b16 %v451
  %v530 = vunpack.c.h.b16 %v451
  %v531 = vunpack.c.l.b16 %v452
  %v532 = vunpack.c.h.b16 %v452
  %v533 = vunpack.c.l.b16 %v453
  %v534 = vunpack.c.h.b16 %v453
  %v535 = vunpack.c.l.b16 %v454
  %v536 = vunpack.c.h.b16 %v454
  %v537 = vunpack.c.l.b16 %v455
  %v538 = vunpack.c.h.b16 %v455
  %v539 = vunpack.c.l.b16 %v456
  %v540 = vunpack.c.h.b16 %v456
  %v541 = vunpack.c.l.b16 %v457
  %v542 = vunpack.c.h.b16 %v457
  %v543 = vunpack.c.l.b16 %v458
  %v544 = vunpack.c.h.b16 %v458
  %v545 = vunpack.c.l.b16 %v459
  %v546 = vunpack.c.h.b16 %v459
  %v547 = vunpack.c.l.b16 %v460
  %v548 = vunpack.c.h.b16 %v460
  %v549 = vunpack.c.l.b16 %v461
  %v550 = vunpack.c.h.b16 %v461
  %v551 = vunpack.c.l.b16 %v462
  %v552 = vunpack.c.h.b16 %v462
  %v553 = vunpack.c.l.b16 %v463
  %v554 = vunpack.c.h.b16 %v463
  %v555 = vunpack.c.l.b16 %v464
  %v556 = vunpack.c.h.b16 %v464
  %v557 = vunpack.c.l.b16 %v465
  %v558 = vunpack.c.h.b16 %v465
  %v559 = vunpack.c.l.b16 %v466
  %v560 = vunpack.c.h.b16 %v466
  %v561 = vunpack.c.l.b16 %v467
  %v562 = vunpack.c.h.b16 %v467
  %v563 = vunpack.c.l.b16 %v468
  %v564 = vunpack.c.h.b16 %v468
  %v565 = vunpack.c.l.b16 %v469
  %v566 = vunpack.c.h.b16 %v469
  %v567 = vunpack.c.l.b16 %v470
  %v568 = vunpack.c.h.b16 %v470
  %v569 = vunpack.c.l.b16 %v471
  %v570 = vunpack.c.h.b16 %v471
  %v571 = vunpack.c.l.b16 %v472
  %v572 = vunpack.c.h.b16 %v472
  %v573 = vunpack.c.l.b16 %v473
  %v574 = vunpack.c.h.b16 %v473
  %v575 = vunpack.c.l.b16 %v474
  %v576 = vunpack.c.h.b16 %v474
  %v577 = vunpack.c.l.b16 %v475
  %v578 = vunpack.c.h.b16 %v475
  %v579 = vunpack.c.l.b16 %v476
  %v580 = vunpack.c.h.b16 %v476
  %v581 = vunpack.c.l.b16 %v477
  %v582 = vunpack.c.h.b16 %v477
  %v583 = vunpack.c.l.b16 %v478
  %v584 = vunpack.c.h.b16 %v478
  %v585 = vunpack.c.l.b16 %v479
  %v586 = vunpack.c.h.b16 %v479
  %v587 = vunpack.c.l.b16 %v480
  %v588 = vunpack.c.h.b16 %v480
  %v589 = vpack.c.b16 %v527, %v525
  %v590 = vpack.c.b16 %v528, %v526
  %v591 = vpack.c.b16 %v531, %v529
  %v592 = vpack.c.b16 %v532, %v530
  %v593 = vpack.c.b16 %v535, %v533
  %v594 = vpack.c.b16 %v536, %v534
  %v595 = vpack.c.b16 %v539, %v537
  %v596 = vpack.c.b16 %v540, %v538
  %v597 = vpack.c.b16 %v543, %v541
  %v598 = vpack.c.b16 %v544, %v542
  %v599 = vpack.c.b16 %v547, %v545
  %v600 = vpack.c.b16 %v548, %v546
  %v601 = vpack.c.b16 %v551, %v549
  %v602 = vpack.c.b16 %v552, %v550
  %v603 = vpack.c.b16 %v555, %v553
  %v604 = vpack.c.b16 %v556, %v554
  %v605 = vpack.c.b16 %v559, %v557
  %v606 = vpack.c.b16 %v560, %v558
  %v607 = vpack.c.b16 %v563, %v561
  %v608 = vpack.c.b16 %v564, %v562
  %v609 = vpack.c.b16 %v567, %v565
  %v610 = vpack.c.b16 %v568, %v566
  %v611 = vpack.c.b16 %v571, %v569
  %v612 = vpack.c.b16 %v572, %v570
  %v613 = vpack.c.b16 %v575, %v573
  %v614 = vpack.c.b16 %v576, %v574
  %v615 = vpack.c.b16 %v579, %v577
  %v616 = vpack.c.b16 %v580, %v578
  %v617 = vpack.c.b16 %v583, %v581
  %v618 = vpack.c.b16 %v584, %v582
  %v619 = vpack.c.b16 %v587, %v585
  %v620 = vpack.c.b16 %v588, %v586
  %653 = vmatprep.subr.bf16.mxu0 %v590
  %654 = vmatpush1.bf16.msra.mxu0 %v589
  %655 = vmatprep.subr.bf16.mxu0 %v592
  %656 = vmatpush1.bf16.msra.mxu0 %v591
  %657 = vmatprep.subr.bf16.mxu0 %v594
  %658 = vmatpush1.bf16.msra.mxu0 %v593
  %659 = vmatprep.subr.bf16.mxu0 %v596
  %660 = vmatpush1.bf16.msra.mxu0 %v595
  %661 = vmatprep.subr.bf16.mxu0 %v598
  %662 = vmatpush1.bf16.msra.mxu0 %v597
  %663 = vmatprep.subr.bf16.mxu0 %v600
  %664 = vmatpush1.bf16.msra.mxu0 %v599
  %665 = vmatprep.subr.bf16.mxu0 %v602
  %666 = vmatpush1.bf16.msra.mxu0 %v601
  %667 = vmatprep.subr.bf16.mxu0 %v604
  %668 = vmatpush1.bf16.msra.mxu0 %v603
  %669 = vmatprep.subr.bf16.mxu0 %v606
  %670 = vmatpush1.bf16.msra.mxu0 %v605
  %671 = vmatprep.subr.bf16.mxu0 %v608
  %672 = vmatpush1.bf16.msra.mxu0 %v607
  %673 = vmatprep.subr.bf16.mxu0 %v610
  %674 = vmatpush1.bf16.msra.mxu0 %v609
  %675 = vmatprep.subr.bf16.mxu0 %v612
  %676 = vmatpush1.bf16.msra.mxu0 %v611
  %677 = vmatprep.subr.bf16.mxu0 %v614
  %678 = vmatpush1.bf16.msra.mxu0 %v613
  %679 = vmatprep.subr.bf16.mxu0 %v616
  %680 = vmatpush1.bf16.msra.mxu0 %v615
  %681 = vmatprep.subr.bf16.mxu0 %v618
  %682 = vmatpush1.bf16.msra.mxu0 %v617
  %683 = vmatprep.subr.bf16.mxu0 %v620
  %684 = vmatpush1.bf16.msra.mxu0 %v619
  %685 = vmatprep.mubr.bf16.mxu0 %v418
  %686 = vmatmul.mubr.bf16.gmra.mrb[0].mxu0 %v417
  %v687 = vpop.f32.mrb[0].mxu0
  %v688 = vadd.f32 %v486, %v687
  %v689 = vpop.f32.mrb[0].mxu0
  %v690 = vadd.f32 %v490, %v689
  %v691 = vpop.f32.mrb[0].mxu0
  %v692 = vadd.f32 %v486, %v691
  %v693 = vpop.f32.mrb[0].mxu0
  %v694 = vadd.f32 %v490, %v693
  %695 = vmatprep.mubr.bf16.mxu0 %v420
  %696 = vmatmul.mubr.bf16.gmra.mrb[0].mxu0 %v419
  %v697 = vpop.f32.mrb[0].mxu0
  %v698 = vadd.f32 %v486, %v697
  %v699 = vpop.f32.mrb[0].mxu0
  %v700 = vadd.f32 %v490, %v699
  %v701 = vpop.f32.mrb[0].mxu0
  %v702 = vadd.f32 %v486, %v701
  %v703 = vpop.f32.mrb[0].mxu0
  %v704 = vadd.f32 %v490, %v703
  %705 = vmatprep.mubr.bf16.mxu0 %v422
  %706 = vmatmul.mubr.bf16.gmra.mrb[0].mxu0 %v421
  %v707 = vpop.f32.mrb[0].mxu0
  %v708 = vadd.f32 %v486, %v707
  %v709 = vpop.f32.mrb[0].mxu0
  %v710 = vadd.f32 %v490, %v709
  %v711 = vpop.f32.mrb[0].mxu0
  %v712 = vadd.f32 %v486, %v711
  %v713 = vpop.f32.mrb[0].mxu0
  %v714 = vadd.f32 %v490, %v713
  %715 = vmatprep.mubr.bf16.mxu0 %v424
  %716 = vmatmul.mubr.bf16.gmra.mrb[0].mxu0 %v423
  %v717 = vpop.f32.mrb[0].mxu0
  %v718 = vadd.f32 %v486, %v717
  %v719 = vpop.f32.mrb[0].mxu0
  %v720 = vadd.f32 %v490, %v719
  %v721 = vpop.f32.mrb[0].mxu0
  %v722 = vadd.f32 %v486, %v721
  %v723 = vpop.f32.mrb[0].mxu0
  %v724 = vadd.f32 %v490, %v723
  %725 = vmatprep.mubr.bf16.mxu0 %v426
  %726 = vmatmul.mubr.bf16.gmra.mrb[0].mxu0 %v425
  %v727 = vpop.f32.mrb[0].mxu0
  %v728 = vadd.f32 %v486, %v727
  %v729 = vpop.f32.mrb[0].mxu0
  %v730 = vadd.f32 %v490, %v729
  %v731 = vpop.f32.mrb[0].mxu0
  %v732 = vadd.f32 %v486, %v731
  %v733 = vpop.f32.mrb[0].mxu0
  %v734 = vadd.f32 %v490, %v733
  %735 = vmatprep.mubr.bf16.mxu0 %v428
  %736 = vmatmul.mubr.bf16.gmra.mrb[0].mxu0 %v427
  %v737 = vpop.f32.mrb[0].mxu0
  %v738 = vadd.f32 %v486, %v737
  %v739 = vpop.f32.mrb[0].mxu0
  %v740 = vadd.f32 %v490, %v739
  %v741 = vpop.f32.mrb[0].mxu0
  %v742 = vadd.f32 %v486, %v741
  %v743 = vpop.f32.mrb[0].mxu0
  %v744 = vadd.f32 %v490, %v743
  %745 = vmatprep.mubr.bf16.mxu0 %v430
  %746 = vmatmul.mubr.bf16.gmra.mrb[0].mxu0 %v429
  %v747 = vpop.f32.mrb[0].mxu0
  %v748 = vadd.f32 %v486, %v747
  %v749 = vpop.f32.mrb[0].mxu0
  %v750 = vadd.f32 %v490, %v749
  %v751 = vpop.f32.mrb[0].mxu0
  %v752 = vadd.f32 %v486, %v751
  %v753 = vpop.f32.mrb[0].mxu0
  %v754 = vadd.f32 %v490, %v753
  %755 = vmatprep.mubr.bf16.mxu0 %v432
  %756 = vmatmul.mubr.bf16.gmra.mrb[0].mxu0 %v431
  %v757 = vpop.f32.mrb[0].mxu0
  %v758 = vadd.f32 %v486, %v757
  %v759 = vpop.f32.mrb[0].mxu0
  %v760 = vadd.f32 %v490, %v759
  %v761 = vpop.f32.mrb[0].mxu0
  %v762 = vadd.f32 %v486, %v761
  %v763 = vpop.f32.mrb[0].mxu0
  %v764 = vadd.f32 %v490, %v763
  %765 = vmatprep.mubr.bf16.mxu0 %v434
  %766 = vmatmul.mubr.bf16.gmra.mrb[0].mxu0 %v433
  %v767 = vpop.f32.mrb[0].mxu0
  %v768 = vadd.f32 %v486, %v767
  %v769 = vpop.f32.mrb[0].mxu0
  %v770 = vadd.f32 %v490, %v769
  %v771 = vpop.f32.mrb[0].mxu0
  %v772 = vadd.f32 %v486, %v771
  %v773 = vpop.f32.mrb[0].mxu0
  %v774 = vadd.f32 %v490, %v773
  %775 = vmatprep.mubr.bf16.mxu0 %v436
  %776 = vmatmul.mubr.bf16.gmra.mrb[0].mxu0 %v435
  %v777 = vpop.f32.mrb[0].mxu0
  %v778 = vadd.f32 %v486, %v777
  %v779 = vpop.f32.mrb[0].mxu0
  %v780 = vadd.f32 %v490, %v779
  %v781 = vpop.f32.mrb[0].mxu0
  %v782 = vadd.f32 %v486, %v781
  %v783 = vpop.f32.mrb[0].mxu0
  %v784 = vadd.f32 %v490, %v783
  %785 = vmatprep.mubr.bf16.mxu0 %v438
  %786 = vmatmul.mubr.bf16.gmra.mrb[0].mxu0 %v437
  %v787 = vpop.f32.mrb[0].mxu0
  %v788 = vadd.f32 %v486, %v787
  %v789 = vpop.f32.mrb[0].mxu0
  %v790 = vadd.f32 %v490, %v789
  %v791 = vpop.f32.mrb[0].mxu0
  %v792 = vadd.f32 %v486, %v791
  %v793 = vpop.f32.mrb[0].mxu0
  %v794 = vadd.f32 %v490, %v793
  %795 = vmatprep.mubr.bf16.mxu0 %v440
  %796 = vmatmul.mubr.bf16.gmra.mrb[0].mxu0 %v439
  %v797 = vpop.f32.mrb[0].mxu0
  %v798 = vadd.f32 %v486, %v797
  %v799 = vpop.f32.mrb[0].mxu0
  %v800 = vadd.f32 %v490, %v799
  %v801 = vpop.f32.mrb[0].mxu0
  %v802 = vadd.f32 %v486, %v801
  %v803 = vpop.f32.mrb[0].mxu0
  %v804 = vadd.f32 %v490, %v803
  %805 = vmatprep.mubr.bf16.mxu0 %v442
  %806 = vmatmul.mubr.bf16.gmra.mrb[0].mxu0 %v441
  %v807 = vpop.f32.mrb[0].mxu0
  %v808 = vadd.f32 %v486, %v807
  %v809 = vpop.f32.mrb[0].mxu0
  %v810 = vadd.f32 %v490, %v809
  %v811 = vpop.f32.mrb[0].mxu0
  %v812 = vadd.f32 %v486, %v811
  %v813 = vpop.f32.mrb[0].mxu0
  %v814 = vadd.f32 %v490, %v813
  %815 = vmatprep.mubr.bf16.mxu0 %v444
  %816 = vmatmul.mubr.bf16.gmra.mrb[0].mxu0 %v443
  %v817 = vpop.f32.mrb[0].mxu0
  %v818 = vadd.f32 %v486, %v817
  %v819 = vpop.f32.mrb[0].mxu0
  %v820 = vadd.f32 %v490, %v819
  %v821 = vpop.f32.mrb[0].mxu0
  %v822 = vadd.f32 %v486, %v821
  %v823 = vpop.f32.mrb[0].mxu0
  %v824 = vadd.f32 %v490, %v823
  %825 = vmatprep.mubr.bf16.mxu0 %v446
  %826 = vmatmul.mubr.bf16.gmra.mrb[0].mxu0 %v445
  %v827 = vpop.f32.mrb[0].mxu0
  %v828 = vadd.f32 %v486, %v827
  %v829 = vpop.f32.mrb[0].mxu0
  %v830 = vadd.f32 %v490, %v829
  %v831 = vpop.f32.mrb[0].mxu0
  %v832 = vadd.f32 %v486, %v831
  %v833 = vpop.f32.mrb[0].mxu0
  %v834 = vadd.f32 %v490, %v833
  %835 = vmatprep.mubr.bf16.mxu0 %v448
  %836 = vmatmul.mubr.bf16.gmra.mrb[0].mxu0 %v447
  %v837 = vpop.f32.mrb[0].mxu0
  %v838 = vadd.f32 %v486, %v837
  %v839 = vpop.f32.mrb[0].mxu0
  %v840 = vadd.f32 %v490, %v839
  %v841 = vpop.f32.mrb[0].mxu0
  %v842 = vadd.f32 %v486, %v841
  %v843 = vpop.f32.mrb[0].mxu0
  %v844 = vadd.f32 %v490, %v843
  %845 = vdwg.mxu0
  %v846 = vmax.f32 %v688, 0.0
  %v847 = vmax.f32 %v690, 0.0
  %v848 = vmax.f32 %v692, 0.0
  %v849 = vmax.f32 %v694, 0.0
  %v850 = vmax.f32 %v698, 0.0
  %v851 = vmax.f32 %v700, 0.0
  %v852 = vmax.f32 %v702, 0.0
  %v853 = vmax.f32 %v704, 0.0
  %v854 = vmax.f32 %v708, 0.0
  %v855 = vmax.f32 %v710, 0.0
  %v856 = vmax.f32 %v712, 0.0
  %v857 = vmax.f32 %v714, 0.0
  %v858 = vmax.f32 %v718, 0.0
  %v859 = vmax.f32 %v720, 0.0
  %v860 = vmax.f32 %v722, 0.0
  %v861 = vmax.f32 %v724, 0.0
  %v862 = vmax.f32 %v728, 0.0
  %v863 = vmax.f32 %v730, 0.0
  %v864 = vmax.f32 %v732, 0.0
  %v865 = vmax.f32 %v734, 0.0
  %v866 = vmax.f32 %v738, 0.0
  %v867 = vmax.f32 %v740, 0.0
  %v868 = vmax.f32 %v742, 0.0
  %v869 = vmax.f32 %v744, 0.0
  %v870 = vmax.f32 %v748, 0.0
  %v871 = vmax.f32 %v750, 0.0
  %v872 = vmax.f32 %v752, 0.0
  %v873 = vmax.f32 %v754, 0.0
  %v874 = vmax.f32 %v758, 0.0
  %v875 = vmax.f32 %v760, 0.0
  %v876 = vmax.f32 %v762, 0.0
  %v877 = vmax.f32 %v764, 0.0
  %v878 = vmax.f32 %v768, 0.0
  %v879 = vmax.f32 %v770, 0.0
  %v880 = vmax.f32 %v772, 0.0
  %v881 = vmax.f32 %v774, 0.0
  %v882 = vmax.f32 %v778, 0.0
  %v883 = vmax.f32 %v780, 0.0
  %v884 = vmax.f32 %v782, 0.0
  %v885 = vmax.f32 %v784, 0.0
  %v886 = vmax.f32 %v788, 0.0
  %v887 = vmax.f32 %v790, 0.0
  %v888 = vmax.f32 %v792, 0.0
  %v889 = vmax.f32 %v794, 0.0
  %v890 = vmax.f32 %v798, 0.0
  %v891 = vmax.f32 %v800, 0.0
  %v892 = vmax.f32 %v802, 0.0
  %v893 = vmax.f32 %v804, 0.0
  %v894 = vmax.f32 %v808, 0.0
  %v895 = vmax.f32 %v810, 0.0
  %v896 = vmax.f32 %v812, 0.0
  %v897 = vmax.f32 %v814, 0.0
  %v898 = vmax.f32 %v818, 0.0
  %v899 = vmax.f32 %v820, 0.0
  %v900 = vmax.f32 %v822, 0.0
  %v901 = vmax.f32 %v824, 0.0
  %v902 = vmax.f32 %v828, 0.0
  %v903 = vmax.f32 %v830, 0.0
  %v904 = vmax.f32 %v832, 0.0
  %v905 = vmax.f32 %v834, 0.0
  %v906 = vmax.f32 %v838, 0.0
  %v907 = vmax.f32 %v840, 0.0
  %v908 = vmax.f32 %v842, 0.0
  %v909 = vmax.f32 %v844, 0.0
  %v910 = vpack.c.bf16 %v848, %v846
  %v911 = vpack.c.bf16 %v849, %v847
  %v912 = vpack.c.bf16 %v852, %v850
  %v913 = vpack.c.bf16 %v853, %v851
  %v914 = vpack.c.bf16 %v856, %v854
  %v915 = vpack.c.bf16 %v857, %v855
  %v916 = vpack.c.bf16 %v860, %v858
  %v917 = vpack.c.bf16 %v861, %v859
  %v918 = vpack.c.bf16 %v864, %v862
  %v919 = vpack.c.bf16 %v865, %v863
  %v920 = vpack.c.bf16 %v868, %v866
  %v921 = vpack.c.bf16 %v869, %v867
  %v922 = vpack.c.bf16 %v872, %v870
  %v923 = vpack.c.bf16 %v873, %v871
  %v924 = vpack.c.bf16 %v876, %v874
  %v925 = vpack.c.bf16 %v877, %v875
  %v926 = vpack.c.bf16 %v880, %v878
  %v927 = vpack.c.bf16 %v881, %v879
  %v928 = vpack.c.bf16 %v884, %v882
  %v929 = vpack.c.bf16 %v885, %v883
  %v930 = vpack.c.bf16 %v888, %v886
  %v931 = vpack.c.bf16 %v889, %v887
  %v932 = vpack.c.bf16 %v892, %v890
  %v933 = vpack.c.bf16 %v893, %v891
  %v934 = vpack.c.bf16 %v896, %v894
  %v935 = vpack.c.bf16 %v897, %v895
  %v936 = vpack.c.bf16 %v900, %v898
  %v937 = vpack.c.bf16 %v901, %v899
  %v938 = vpack.c.bf16 %v904, %v902
  %v939 = vpack.c.bf16 %v905, %v903
  %v940 = vpack.c.bf16 %v908, %v906
  %v941 = vpack.c.bf16 %v909, %v907
  %v942 = vld [vmem:[%s5] sm:$0xf]
  %v943 = vld [vmem:[%s5 + $0x4] sm:$0xf]
  %v944 = vld [vmem:[%s5 + $0x8] sm:$0xf]
  %v945 = vld [vmem:[%s5 + $0xc] sm:$0xf]
  %v946 = vld [vmem:[%s5 + $0x10] sm:$0xf]
  %v947 = vld [vmem:[%s5 + $0x14] sm:$0xf]
  %v948 = vld [vmem:[%s5 + $0x18] sm:$0xf]
  %v949 = vld [vmem:[%s5 + $0x1c] sm:$0xf]
  %v950 = vld [vmem:[%s5 + $0x20] sm:$0xf]
  %v951 = vld [vmem:[%s5 + $0x24] sm:$0xf]
  %v952 = vld [vmem:[%s5 + $0x28] sm:$0xf]
  %v953 = vld [vmem:[%s5 + $0x2c] sm:$0xf]
  %v954 = vld [vmem:[%s5 + $0x30] sm:$0xf]
  %v955 = vld [vmem:[%s5 + $0x34] sm:$0xf]
  %v956 = vld [vmem:[%s5 + $0x38] sm:$0xf]
  %v957 = vld [vmem:[%s5 + $0x3c] sm:$0xf]
  %v958 = vld [vmem:[%s5 + $0x40] sm:$0xf]
  %v959 = vld [vmem:[%s5 + $0x44] sm:$0xf]
  %v960 = vld [vmem:[%s5 + $0x48] sm:$0xf]
  %v961 = vld [vmem:[%s5 + $0x4c] sm:$0xf]
  %v962 = vld [vmem:[%s5 + $0x50] sm:$0xf]
  %v963 = vld [vmem:[%s5 + $0x54] sm:$0xf]
  %v964 = vld [vmem:[%s5 + $0x58] sm:$0xf]
  %v965 = vld [vmem:[%s5 + $0x5c] sm:$0xf]
  %v966 = vld [vmem:[%s5 + $0x60] sm:$0xf]
  %v967 = vld [vmem:[%s5 + $0x64] sm:$0xf]
  %v968 = vld [vmem:[%s5 + $0x68] sm:$0xf]
  %v969 = vld [vmem:[%s5 + $0x6c] sm:$0xf]
  %v970 = vld [vmem:[%s5 + $0x70] sm:$0xf]
  %v971 = vld [vmem:[%s5 + $0x74] sm:$0xf]
  %v972 = vld [vmem:[%s5 + $0x78] sm:$0xf]
  %v973 = vld [vmem:[%s5 + $0x7c] sm:$0xf]
  %v974 = vld [vmem:[%s6] sm:$0x1]
  %v976 = vlaneseq
  %v977 = vshrl.u32 %v976, 7
  %v978 = vsub.s32 0, %v977
  %v979 = vrot.slane %v974, %v978
  %v1013 = vunpack.c.l.b16 %v942
  %v1014 = vunpack.c.l.b16 %v943
  %v1015 = vunpack.c.l.b16 %v944
  %v1016 = vunpack.c.l.b16 %v945
  %v1017 = vunpack.c.l.b16 %v946
  %v1018 = vunpack.c.l.b16 %v947
  %v1019 = vunpack.c.l.b16 %v948
  %v1020 = vunpack.c.l.b16 %v949
  %v1021 = vunpack.c.l.b16 %v950
  %v1022 = vunpack.c.l.b16 %v951
  %v1023 = vunpack.c.l.b16 %v952
  %v1024 = vunpack.c.l.b16 %v953
  %v1025 = vunpack.c.l.b16 %v954
  %v1026 = vunpack.c.l.b16 %v955
  %v1027 = vunpack.c.l.b16 %v956
  %v1028 = vunpack.c.l.b16 %v957
  %v1029 = vunpack.c.l.b16 %v958
  %v1030 = vunpack.c.l.b16 %v959
  %v1031 = vunpack.c.l.b16 %v960
  %v1032 = vunpack.c.l.b16 %v961
  %v1033 = vunpack.c.l.b16 %v962
  %v1034 = vunpack.c.l.b16 %v963
  %v1035 = vunpack.c.l.b16 %v964
  %v1036 = vunpack.c.l.b16 %v965
  %v1037 = vunpack.c.l.b16 %v966
  %v1038 = vunpack.c.l.b16 %v967
  %v1039 = vunpack.c.l.b16 %v968
  %v1040 = vunpack.c.l.b16 %v969
  %v1041 = vunpack.c.l.b16 %v970
  %v1042 = vunpack.c.l.b16 %v971
  %v1043 = vunpack.c.l.b16 %v972
  %v1044 = vunpack.c.l.b16 %v973
  %v1045 = vpack.c.b16 %v1014, %v1013
  %v1046 = vpack.c.b16 %v1016, %v1015
  %v1047 = vpack.c.b16 %v1018, %v1017
  %v1048 = vpack.c.b16 %v1020, %v1019
  %v1049 = vpack.c.b16 %v1022, %v1021
  %v1050 = vpack.c.b16 %v1024, %v1023
  %v1051 = vpack.c.b16 %v1026, %v1025
  %v1052 = vpack.c.b16 %v1028, %v1027
  %v1053 = vpack.c.b16 %v1030, %v1029
  %v1054 = vpack.c.b16 %v1032, %v1031
  %v1055 = vpack.c.b16 %v1034, %v1033
  %v1056 = vpack.c.b16 %v1036, %v1035
  %v1057 = vpack.c.b16 %v1038, %v1037
  %v1058 = vpack.c.b16 %v1040, %v1039
  %v1059 = vpack.c.b16 %v1042, %v1041
  %v1060 = vpack.c.b16 %v1044, %v1043
  %1077 = vmatprep.subr.bf16.mxu0 0
  %1078 = vmatpush1.bf16.msra.mxu0 %v1045
  %1079 = vmatprep.subr.bf16.mxu0 0
  %1080 = vmatpush1.bf16.msra.mxu0 %v1046
  %1081 = vmatprep.subr.bf16.mxu0 0
  %1082 = vmatpush1.bf16.msra.mxu0 %v1047
  %1083 = vmatprep.subr.bf16.mxu0 0
  %1084 = vmatpush1.bf16.msra.mxu0 %v1048
  %1085 = vmatprep.subr.bf16.mxu0 0
  %1086 = vmatpush1.bf16.msra.mxu0 %v1049
  %1087 = vmatprep.subr.bf16.mxu0 0
  %1088 = vmatpush1.bf16.msra.mxu0 %v1050
  %1089 = vmatprep.subr.bf16.mxu0 0
  %1090 = vmatpush1.bf16.msra.mxu0 %v1051
  %1091 = vmatprep.subr.bf16.mxu0 0
  %1092 = vmatpush1.bf16.msra.mxu0 %v1052
  %1093 = vmatprep.subr.bf16.mxu0 0
  %1094 = vmatpush1.bf16.msra.mxu0 %v1053
  %1095 = vmatprep.subr.bf16.mxu0 0
  %1096 = vmatpush1.bf16.msra.mxu0 %v1054
  %1097 = vmatprep.subr.bf16.mxu0 0
  %1098 = vmatpush1.bf16.msra.mxu0 %v1055
  %1099 = vmatprep.subr.bf16.mxu0 0
  %1100 = vmatpush1.bf16.msra.mxu0 %v1056
  %1101 = vmatprep.subr.bf16.mxu0 0
  %1102 = vmatpush1.bf16.msra.mxu0 %v1057
  %1103 = vmatprep.subr.bf16.mxu0 0
  %1104 = vmatpush1.bf16.msra.mxu0 %v1058
  %1105 = vmatprep.subr.bf16.mxu0 0
  %1106 = vmatpush1.bf16.msra.mxu0 %v1059
  %1107 = vmatprep.subr.bf16.mxu0 0
  %1108 = vmatpush1.bf16.msra.mxu0 %v1060
  %1109 = vmatprep.mubr.bf16.mxu0 %v911
  %1110 = vmatmul.mubr.bf16.gmra.mrb[0].mxu0 %v910
  %v1111 = vpop.f32.mrb[0].mxu0
  %v1112 = vadd.f32 %v979, %v1111
  %v1113 = vpop.f32.mrb[0].mxu0
  %v1114 = vpop.f32.mrb[0].mxu0
  %v1115 = vadd.f32 %v979, %v1114
  %v1116 = vpop.f32.mrb[0].mxu0
  %1117 = vmatprep.mubr.bf16.mxu0 %v913
  %1118 = vmatmul.mubr.bf16.gmra.mrb[0].mxu0 %v912
  %v1119 = vpop.f32.mrb[0].mxu0
  %v1120 = vadd.f32 %v979, %v1119
  %v1121 = vpop.f32.mrb[0].mxu0
  %v1122 = vpop.f32.mrb[0].mxu0
  %v1123 = vadd.f32 %v979, %v1122
  %v1124 = vpop.f32.mrb[0].mxu0
  %1125 = vmatprep.mubr.bf16.mxu0 %v915
  %1126 = vmatmul.mubr.bf16.gmra.mrb[0].mxu0 %v914
  %v1127 = vpop.f32.mrb[0].mxu0
  %v1128 = vadd.f32 %v979, %v1127
  %v1129 = vpop.f32.mrb[0].mxu0
  %v1130 = vpop.f32.mrb[0].mxu0
  %v1131 = vadd.f32 %v979, %v1130
  %v1132 = vpop.f32.mrb[0].mxu0
  %1133 = vmatprep.mubr.bf16.mxu0 %v917
  %1134 = vmatmul.mubr.bf16.gmra.mrb[0].mxu0 %v916
  %v1135 = vpop.f32.mrb[0].mxu0
  %v1136 = vadd.f32 %v979, %v1135
  %v1137 = vpop.f32.mrb[0].mxu0
  %v1138 = vpop.f32.mrb[0].mxu0
  %v1139 = vadd.f32 %v979, %v1138
  %v1140 = vpop.f32.mrb[0].mxu0
  %1141 = vmatprep.mubr.bf16.mxu0 %v919
  %1142 = vmatmul.mubr.bf16.gmra.mrb[0].mxu0 %v918
  %v1143 = vpop.f32.mrb[0].mxu0
  %v1144 = vadd.f32 %v979, %v1143
  %v1145 = vpop.f32.mrb[0].mxu0
  %v1146 = vpop.f32.mrb[0].mxu0
  %v1147 = vadd.f32 %v979, %v1146
  %v1148 = vpop.f32.mrb[0].mxu0
  %1149 = vmatprep.mubr.bf16.mxu0 %v921
  %1150 = vmatmul.mubr.bf16.gmra.mrb[0].mxu0 %v920
  %v1151 = vpop.f32.mrb[0].mxu0
  %v1152 = vadd.f32 %v979, %v1151
  %v1153 = vpop.f32.mrb[0].mxu0
  %v1154 = vpop.f32.mrb[0].mxu0
  %v1155 = vadd.f32 %v979, %v1154
  %v1156 = vpop.f32.mrb[0].mxu0
  %1157 = vmatprep.mubr.bf16.mxu0 %v923
  %1158 = vmatmul.mubr.bf16.gmra.mrb[0].mxu0 %v922
  %v1159 = vpop.f32.mrb[0].mxu0
  %v1160 = vadd.f32 %v979, %v1159
  %v1161 = vpop.f32.mrb[0].mxu0
  %v1162 = vpop.f32.mrb[0].mxu0
  %v1163 = vadd.f32 %v979, %v1162
  %v1164 = vpop.f32.mrb[0].mxu0
  %1165 = vmatprep.mubr.bf16.mxu0 %v925
  %1166 = vmatmul.mubr.bf16.gmra.mrb[0].mxu0 %v924
  %v1167 = vpop.f32.mrb[0].mxu0
  %v1168 = vadd.f32 %v979, %v1167
  %v1169 = vpop.f32.mrb[0].mxu0
  %v1170 = vpop.f32.mrb[0].mxu0
  %v1171 = vadd.f32 %v979, %v1170
  %v1172 = vpop.f32.mrb[0].mxu0
  %1173 = vmatprep.mubr.bf16.mxu0 %v927
  %1174 = vmatmul.mubr.bf16.gmra.mrb[0].mxu0 %v926
  %v1175 = vpop.f32.mrb[0].mxu0
  %v1176 = vadd.f32 %v979, %v1175
  %v1177 = vpop.f32.mrb[0].mxu0
  %v1178 = vpop.f32.mrb[0].mxu0
  %v1179 = vadd.f32 %v979, %v1178
  %v1180 = vpop.f32.mrb[0].mxu0
  %1181 = vmatprep.mubr.bf16.mxu0 %v929
  %1182 = vmatmul.mubr.bf16.gmra.mrb[0].mxu0 %v928
  %v1183 = vpop.f32.mrb[0].mxu0
  %v1184 = vadd.f32 %v979, %v1183
  %v1185 = vpop.f32.mrb[0].mxu0
  %v1186 = vpop.f32.mrb[0].mxu0
  %v1187 = vadd.f32 %v979, %v1186
  %v1188 = vpop.f32.mrb[0].mxu0
  %1189 = vmatprep.mubr.bf16.mxu0 %v931
  %1190 = vmatmul.mubr.bf16.gmra.mrb[0].mxu0 %v930
  %v1191 = vpop.f32.mrb[0].mxu0
  %v1192 = vadd.f32 %v979, %v1191
  %v1193 = vpop.f32.mrb[0].mxu0
  %v1194 = vpop.f32.mrb[0].mxu0
  %v1195 = vadd.f32 %v979, %v1194
  %v1196 = vpop.f32.mrb[0].mxu0
  %1197 = vmatprep.mubr.bf16.mxu0 %v933
  %1198 = vmatmul.mubr.bf16.gmra.mrb[0].mxu0 %v932
  %v1199 = vpop.f32.mrb[0].mxu0
  %v1200 = vadd.f32 %v979, %v1199
  %v1201 = vpop.f32.mrb[0].mxu0
  %v1202 = vpop.f32.mrb[0].mxu0
  %v1203 = vadd.f32 %v979, %v1202
  %v1204 = vpop.f32.mrb[0].mxu0
  %1205 = vmatprep.mubr.bf16.mxu0 %v935
  %1206 = vmatmul.mubr.bf16.gmra.mrb[0].mxu0 %v934
  %v1207 = vpop.f32.mrb[0].mxu0
  %v1208 = vadd.f32 %v979, %v1207
  %v1209 = vpop.f32.mrb[0].mxu0
  %v1210 = vpop.f32.mrb[0].mxu0
  %v1211 = vadd.f32 %v979, %v1210
  %v1212 = vpop.f32.mrb[0].mxu0
  %1213 = vmatprep.mubr.bf16.mxu0 %v937
  %1214 = vmatmul.mubr.bf16.gmra.mrb[0].mxu0 %v936
  %v1215 = vpop.f32.mrb[0].mxu0
  %v1216 = vadd.f32 %v979, %v1215
  %v1217 = vpop.f32.mrb[0].mxu0
  %v1218 = vpop.f32.mrb[0].mxu0
  %v1219 = vadd.f32 %v979, %v1218
  %v1220 = vpop.f32.mrb[0].mxu0
  %1221 = vmatprep.mubr.bf16.mxu0 %v939
  %1222 = vmatmul.mubr.bf16.gmra.mrb[0].mxu0 %v938
  %v1223 = vpop.f32.mrb[0].mxu0
  %v1224 = vadd.f32 %v979, %v1223
  %v1225 = vpop.f32.mrb[0].mxu0
  %v1226 = vpop.f32.mrb[0].mxu0
  %v1227 = vadd.f32 %v979, %v1226
  %v1228 = vpop.f32.mrb[0].mxu0
  %1229 = vmatprep.mubr.bf16.mxu0 %v941
  %1230 = vmatmul.mubr.bf16.gmra.mrb[0].mxu0 %v940
  %v1231 = vpop.f32.mrb[0].mxu0
  %v1232 = vadd.f32 %v979, %v1231
  %v1233 = vpop.f32.mrb[0].mxu0
  %v1234 = vpop.f32.mrb[0].mxu0
  %v1235 = vadd.f32 %v979, %v1234
  %v1236 = vpop.f32.mrb[0].mxu0
  %1237 = vdwg.mxu0
  %vm1238 = vcmask 130048
  %1239 = vst.msk [vmem:[%s7] sm:$0xff] %vm1238, %v1112
  %1240 = vst.msk [vmem:[%s7 + $0x8] sm:$0xff] %vm1238, %v1115
  %1241 = vst.msk [vmem:[%s7 + $0x10] sm:$0xff] %vm1238, %v1120
  %1242 = vst.msk [vmem:[%s7 + $0x18] sm:$0xff] %vm1238, %v1123
  %1243 = vst.msk [vmem:[%s7 + $0x20] sm:$0xff] %vm1238, %v1128
  %1244 = vst.msk [vmem:[%s7 + $0x28] sm:$0xff] %vm1238, %v1131
  %1245 = vst.msk [vmem:[%s7 + $0x30] sm:$0xff] %vm1238, %v1136
  %1246 = vst.msk [vmem:[%s7 + $0x38] sm:$0xff] %vm1238, %v1139
  %1247 = vst.msk [vmem:[%s7 + $0x40] sm:$0xff] %vm1238, %v1144
  %1248 = vst.msk [vmem:[%s7 + $0x48] sm:$0xff] %vm1238, %v1147
  %1249 = vst.msk [vmem:[%s7 + $0x50] sm:$0xff] %vm1238, %v1152
  %1250 = vst.msk [vmem:[%s7 + $0x58] sm:$0xff] %vm1238, %v1155
  %1251 = vst.msk [vmem:[%s7 + $0x60] sm:$0xff] %vm1238, %v1160
  %1252 = vst.msk [vmem:[%s7 + $0x68] sm:$0xff] %vm1238, %v1163
  %1253 = vst.msk [vmem:[%s7 + $0x70] sm:$0xff] %vm1238, %v1168
  %1254 = vst.msk [vmem:[%s7 + $0x78] sm:$0xff] %vm1238, %v1171
  %1255 = vst.msk [vmem:[%s7 + $0x80] sm:$0xff] %vm1238, %v1176
  %1256 = vst.msk [vmem:[%s7 + $0x88] sm:$0xff] %vm1238, %v1179
  %1257 = vst.msk [vmem:[%s7 + $0x90] sm:$0xff] %vm1238, %v1184
  %1258 = vst.msk [vmem:[%s7 + $0x98] sm:$0xff] %vm1238, %v1187
  %1259 = vst.msk [vmem:[%s7 + $0xa0] sm:$0xff] %vm1238, %v1192
  %1260 = vst.msk [vmem:[%s7 + $0xa8] sm:$0xff] %vm1238, %v1195
  %1261 = vst.msk [vmem:[%s7 + $0xb0] sm:$0xff] %vm1238, %v1200
  %1262 = vst.msk [vmem:[%s7 + $0xb8] sm:$0xff] %vm1238, %v1203
  %1263 = vst.msk [vmem:[%s7 + $0xc0] sm:$0xff] %vm1238, %v1208
  %1264 = vst.msk [vmem:[%s7 + $0xc8] sm:$0xff] %vm1238, %v1211
  %1265 = vst.msk [vmem:[%s7 + $0xd0] sm:$0xff] %vm1238, %v1216
  %1266 = vst.msk [vmem:[%s7 + $0xd8] sm:$0xff] %vm1238, %v1219
  %1267 = vst.msk [vmem:[%s7 + $0xe0] sm:$0xff] %vm1238, %v1224
  %1268 = vst.msk [vmem:[%s7 + $0xe8] sm:$0xff] %vm1238, %v1227
  %1269 = vst.msk [vmem:[%s7 + $0xf0] sm:$0xff] %vm1238, %v1232
  %1270 = vst.msk [vmem:[%s7 + $0xf8] sm:$0xff] %vm1238, %v1235
  // Predicated region
  $region30: #{tpu_custom_call.1} parent=0 // pred_check
    _
  $region31: #{tpu_custom_call.1} parent=0 // pred_check_branch
    %1272 = sbr.rel (0) target = $region33
  $region32: #{tpu_custom_call.1} parent=0 // pred_region
    _
  $region33: #{tpu_custom_call.1} parent=0 // pred_fallthru
    _
  // Predicated region
  $region34: #{tpu_custom_call.1} parent=0 // pred_check
    _
  $region35: #{tpu_custom_call.1} parent=0 // pred_check_branch
    %1274 = sbr.rel (0) target = $region37
  $region36: #{tpu_custom_call.1} parent=0 // pred_region
    _
  $region37: #{tpu_custom_call.1} parent=0 // pred_fallthru
    _

</llo_original>
